<compile_context>
chip_gen: v6e
topology: v6e:2x2x1
jax: 0.10.0
libtpu: 0.0.40
codegen_flags: <defaults>
</compile_context>

<pallas_src>
import jax
import jax.numpy as jnp
import numpy as np
from jax import lax
from jax.experimental import pallas as pl
from jax.experimental.pallas import tpu as pltpu


def _make_kernel(D, NP, E, OUT_PAD, offs, dot_dtype):
    f32 = jnp.float32
    TWO_E = 2 * E
    OUT_W = 3 + 2 * D
    o_sw1, o_sw2, o_wblk, o_w2blk, o_w13a, o_w13b = offs

    def kernel(idx_ref, nf_ref, w_ref, b_ref, out_ref):
        dd = dot_dtype

        # ---- bias slab (f32), one load, static in-register slices -----------
        b = b_ref[...]
        sw1_r0 = b[0:1, :D]          # scalar_net row for |r|^2
        sb1    = b[1:2, :D]
        sb2    = b[2:3, :D]
        b2a    = b[3:4, :3 * D]      # tile(n2b1, 3)
        b2b    = b[4:5, :3]          # n2b2 broadcast over xyz
        b13a   = b[5:6, :2 * D]      # [n1b1 | n3b1]
        b13b   = b[6:7, :3 + D]      # [n1b2 | n3b2]

        # ---- per-channel node features: [xh | x | exact 1/clamp(count,1)] ---
        nf = nf_ref[...]                                   # (NP, D+4) f32
        xh = nf[:, :D]
        inv_count = nf[:, D + 3:D + 4]
        gather_src = nf[:, :D + 3].astype(dd)

        # ---- one-hot gather (2E,NP) / scatter (NP,E) matrices (MXU path) ----
        # TODO(synk): replace with scalar-prefetched index gathers for large N*E.
        idx_col = idx_ref[0:TWO_E, 0:1]                    # [idx0; idx1]
        idx_row = idx_ref[TWO_E:TWO_E + 1, 0:E]            # idx0 along lanes
        gat = (lax.broadcasted_iota(jnp.int32, (TWO_E, NP), 1) == idx_col).astype(dd)
        scat = (lax.broadcasted_iota(jnp.int32, (NP, E), 0) == idx_row).astype(dd)

        # ---- single fused gather of [xh | x] for both edge endpoints --------
        g = jnp.dot(gat, gather_src, preferred_element_type=f32)   # (2E, D+3)
        gh0, gx0 = g[:E, :D], g[:E, D:D + 3]
        gh1, gx1 = g[E:, :D], g[E:, D:D + 3]

        rij = gx0 - gx1                                             # (E, 3)
        r2 = jnp.sum(rij * rij, axis=-1, keepdims=True)             # (E, 1)
        dirv = rij * lax.rsqrt(r2)   # NaN for self-edges, same as reference

        # ---- scalar_net: K kept lane-aligned at 2D; r2 is a rank-1 VPU term -
        hh = jnp.concatenate([gh0, gh1], axis=-1)                   # (E, 2D)
        pre = (jnp.dot(hh.astype(dd), w_ref[o_sw1:o_sw1 + 2 * D, :D],
                       preferred_element_type=f32) + r2 * sw1_r0 + sb1)
        mij = (jnp.dot(jax.nn.silu(pre).astype(dd), w_ref[o_sw2:o_sw2 + D, :D],
                       preferred_element_type=f32) + sb2)           # (E, D)

        # ---- messages for 3 spatial components; exact scatter-mean ----------
        msg = jnp.concatenate([mij * dirv[:, k:k + 1] for k in range(3)], axis=-1)
        agg = (jnp.dot(scat, msg.astype(dd), preferred_element_type=f32)
               * inv_count)                                         # (NP, 3D)

        a0, a1, a2 = agg[:, :D], agg[:, D:2 * D], agg[:, 2 * D:3 * D]
        norm = jnp.sqrt(a0 * a0 + a1 * a1 + a2 * a2)                # (NP, D)

        # ---- node_net2 via block-diagonal weights (xyz stays lane-packed) ---
        h2 = jax.nn.silu(jnp.dot(agg.astype(dd),
                                 w_ref[o_wblk:o_wblk + 3 * D, :3 * D],
                                 preferred_element_type=f32) + b2a)
        o2 = (jnp.dot(h2.astype(dd), w_ref[o_w2blk:o_w2blk + 3 * D, :3],
                      preferred_element_type=f32) + b2b)            # (NP, 3)

        # ---- node_net1 + node_net3 fused into two matmuls --------------------
        lhs13 = jnp.concatenate([xh, norm], axis=-1).astype(dd)     # (NP, 2D)
        h13 = jax.nn.silu(jnp.dot(lhs13, w_ref[o_w13a:o_w13a + 2 * D, :2 * D],
                                  preferred_element_type=f32) + b13a)
        o13 = (jnp.dot(h13.astype(dd), w_ref[o_w13b:o_w13b + 2 * D, :3 + D],
                       preferred_element_type=f32) + b13b)          # (NP, 3+D)

        x_out = o13[:, :3] + o2
        new_h = o13[:, 3:3 + D]

        # lane-dense packed store: [x_out | new_h | norm | zero pad to 128*k]
        pieces = [x_out, new_h, norm]
        if OUT_PAD > OUT_W:
            pieces.append(jnp.zeros((NP, OUT_PAD - OUT_W), f32))
        out_ref[...] = jnp.concatenate(pieces, axis=-1)

    return kernel


def local_update_forward(x, xh, e, params, *, dot_dtype=jnp.float32):
    f32 = jnp.float32
    C, N, D = xh.shape
    E = e.shape[1]
    NP = -(-N // 8) * 8                 # pad node rows to sublane multiple
    WMAX = 3 * D
    OUT_W = 3 + 2 * D
    OUT_PAD = -(-OUT_W // 128) * 128

    idx0 = e[0].astype(jnp.int32)
    idx1 = e[1].astype(jnp.int32)

    # ---- single int32 index slab: column 0 = [idx0; idx1], row 2E = idx0 ----
    idx_slab = jnp.zeros((2 * E + 8, E), jnp.int32)
    idx_slab = idx_slab.at[0:E, 0].set(idx0)
    idx_slab = idx_slab.at[E:2 * E, 0].set(idx1)
    idx_slab = idx_slab.at[2 * E, :].set(idx0)

    # ---- node-feature slab: [xh | x | exact 1/clamp(count,1)], rows padded --
    counts = jnp.zeros((N,), f32).at[idx0].add(1.0)
    inv_count = 1.0 / jnp.maximum(counts, 1.0)
    nf = jnp.concatenate(
        [xh.astype(f32), x.astype(f32),
         jnp.broadcast_to(inv_count[None, :, None], (C, N, 1))], axis=-1)
    if NP != N:
        pad = jnp.zeros((C, NP - N, D + 4), f32).at[:, :, D + 3].set(1.0)
        nf = jnp.concatenate([nf, pad], axis=1)
    node_feat = nf.reshape(C * NP, D + 4)

    # ---- wrapper-side weight fusion / block-diagonalization -----------------
    sw1, sb1, sw2, sb2 = params["scalar_net"]
    n1w1, n1b1, n1w2, n1b2 = params["node_net1"]
    n2w1, n2b1, n2w2, n2b2 = params["node_net2"]
    n3w1, n3b1, n3w2, n3b2 = params["node_net3"]

    w13a = jnp.concatenate(
        [jnp.concatenate([n1w1, n3w1[:D]], axis=1),
         jnp.concatenate([jnp.zeros((D, D), f32), n3w1[D:]], axis=1)], axis=0)
    w13b = jnp.concatenate(
        [jnp.concatenate([n1w2, jnp.zeros((D, D), f32)], axis=1),
         jnp.concatenate([jnp.zeros((D, 3), f32), n3w2], axis=1)], axis=0)
    w2blk_a = jnp.kron(jnp.eye(3, dtype=f32), n2w1)      # (3D, 3D)
    w2blk_b = jnp.kron(jnp.eye(3, dtype=f32), n2w2)      # (3D, 3)

    sections = [sw1[1:], sw2, w2blk_a, w2blk_b, w13a, w13b]
    offs, chunks, off = [], [], 0
    for m in sections:
        r, c = m.shape
        rp = -(-r // 8) * 8
        chunks.append(jnp.zeros((rp, WMAX), f32).at[:r, :c].set(m))
        offs.append(off)
        off += rp
    w_slab = jnp.concatenate(chunks, axis=0).astype(dot_dtype)

    bias_slab = jnp.zeros((8, WMAX), f32)
    bias_slab = bias_slab.at[0, :D].set(sw1[0])
    bias_slab = bias_slab.at[1, :D].set(sb1)
    bias_slab = bias_slab.at[2, :D].set(sb2)
    bias_slab = bias_slab.at[3, :3 * D].set(jnp.tile(n2b1, 3))
    bias_slab = bias_slab.at[4, :3].set(jnp.broadcast_to(n2b2, (3,)))
    bias_slab = bias_slab.at[5, :2 * D].set(jnp.concatenate([n1b1, n3b1]))
    bias_slab = bias_slab.at[6, :3 + D].set(jnp.concatenate([n1b2, n3b2]))

    kernel = _make_kernel(D, NP, E, OUT_PAD, tuple(offs), dot_dtype)

    flops = 2 * C * (2 * E * NP * (D + 3) + E * 2 * D * D + E * D * D
                     + NP * E * 3 * D + NP * 3 * D * 3 * D + NP * 3 * D * 3
                     + NP * 2 * D * 2 * D + NP * 2 * D * (3 + D))
    transcendentals = C * (E * D + NP * 5 * D + NP * D + E)
    bytes_accessed = int(idx_slab.size * 4 + node_feat.size * 4
                         + w_slab.size * jnp.dtype(dot_dtype).itemsize
                         + bias_slab.size * 4 + C * NP * OUT_PAD * 4)

    packed = pl.pallas_call(
        kernel,
        out_shape=jax.ShapeDtypeStruct((C * NP, OUT_PAD), f32),
        grid=(C,),
        in_specs=[
            pl.BlockSpec((2 * E + 8, E), lambda c: (0, 0)),
            pl.BlockSpec((NP, D + 4), lambda c: (c, 0)),
            pl.BlockSpec(w_slab.shape, lambda c: (0, 0)),
            pl.BlockSpec((8, WMAX), lambda c: (0, 0)),
        ],
        out_specs=pl.BlockSpec((NP, OUT_PAD), lambda c: (c, 0)),
        compiler_params=pltpu.CompilerParams(dimension_semantics=("parallel",)),
        cost_estimate=pl.CostEstimate(flops=flops,
                                      transcendentals=transcendentals,
                                      bytes_accessed=bytes_accessed),
    )(idx_slab, node_feat, w_slab, bias_slab)

    packed = packed.reshape(C, NP, OUT_PAD)[:, :N, :]
    x_out = packed[..., :3]
    new_h = packed[..., 3:3 + D]
    norm = packed[..., 3 + D:3 + 2 * D]
    return x_out, new_h, norm


# ------------------------------ pure-JAX reference ------------------------------
def _mlp(z, w1, b1, w2, b2):
    return jnp.dot(jax.nn.silu(jnp.dot(z, w1) + b1), w2) + b2


def reference(x, xh, e, params):
    C, N, D = xh.shape
    idx0, idx1 = e[0], e[1]
    sw1, sb1, sw2, sb2 = params["scalar_net"]
    n1w1, n1b1, n1w2, n1b2 = params["node_net1"]
    n2w1, n2b1, n2w2, n2b2 = params["node_net2"]
    n3w1, n3b1, n3w2, n3b2 = params["node_net3"]

    rij = x[:, idx0, :] - x[:, idx1, :]
    hij = jnp.concatenate([xh[:, idx0, :], xh[:, idx1, :]], axis=-1)
    dirv = rij / jnp.linalg.norm(rij, axis=-1, keepdims=True)
    scalar = jnp.concatenate([jnp.sum(rij ** 2, -1, keepdims=True), hij], axis=-1)
    mij = _mlp(scalar, sw1, sb1, sw2, sb2)
    mij4 = mij[..., None] * dirv[..., None, :]                          # (C,E,D,3)

    agg = jnp.zeros((C, N, D, 3), jnp.float32).at[:, idx0].add(mij4)
    cnt = jnp.zeros((C, N, D, 3), jnp.float32).at[:, idx0].add(jnp.ones_like(mij4))
    agg = agg / jnp.maximum(cnt, 1.0)

    norm = jnp.linalg.norm(agg, axis=-1)                                # (C,N,D)
    o1 = _mlp(xh, n1w1, n1b1, n1w2, n1b2)                               # (C,N,3)
    o2 = _mlp(jnp.swapaxes(agg, -2, -1), n2w1, n2b1, n2w2, n2b2)[..., 0]  # (C,N,3)
    x_out = o1 + o2
    new_h = _mlp(jnp.concatenate([xh, norm], axis=-1), n3w1, n3b1, n3w2, n3b2)
    return x_out, new_h, norm


# ------------------------------------ main ---------------------------------------
if __name__ == "__main__":
    C, N, D, E = 2, 8, 16, 16

    key = jax.random.PRNGKey(0)
    ks = jax.random.split(key, 12)

    def lin(k, fin, fout, scale=0.2):
        kw, kb = jax.random.split(k)
        return (scale * jax.random.normal(kw, (fin, fout), jnp.float32),
                scale * jax.random.normal(kb, (fout,), jnp.float32))

    params = {
        "scalar_net": lin(ks[0], 2 * D + 1, D) + lin(ks[1], D, D),
        "node_net1":  lin(ks[2], D, D) + lin(ks[3], D, 3),
        "node_net2":  lin(ks[4], D, D) + lin(ks[5], D, 1),
        "node_net3":  lin(ks[6], 2 * D, D) + lin(ks[7], D, D),
    }

    x = jax.random.normal(ks[8], (C, N, 3), jnp.float32)
    xh = jax.random.normal(ks[9], (C, N, D), jnp.float32)
    idx0 = jax.random.randint(ks[10], (E,), 0, N, dtype=jnp.int32)
    off = jax.random.randint(ks[11], (E,), 1, N, dtype=jnp.int32)
    idx1 = (idx0 + off) % N          # guarantee idx0 != idx1 so ||rij|| > 0
    e = jnp.stack([idx0, idx1], axis=0)

    refs = reference(x, xh, e, params)

    # f32 path (exact mean, exact reciprocal): tight tolerance.
    outs = jax.block_until_ready(local_update_forward(x, xh, e, params))
    for got, want in zip(outs, refs):
        np.testing.assert_allclose(np.asarray(got), np.asarray(want),
                                   rtol=1e-3, atol=1e-3)

    # bf16 MXU fast path (v6e/v7x): one-hot gather/scatter exact, f32 accumulation.
    outs_bf16 = jax.block_until_ready(
        local_update_forward(x, xh, e, params, dot_dtype=jnp.bfloat16))
    for got, want in zip(outs_bf16, refs):
        np.testing.assert_allclose(np.asarray(got), np.asarray(want),
                                   rtol=1e-1, atol=1e-1)

    print("KERNEL_OK")
</pallas_src>

<mosaic_0001>
module attributes {stable_mosaic.version = 11 : i64} {
  func.func @kernel(%arg0: i32, %arg1: memref<40x16xi32, #tpu.memory_space<vmem>>, %arg2: memref<8x20xf32, #tpu.memory_space<vmem>>, %arg3: memref<208x48xf32, #tpu.memory_space<vmem>>, %arg4: memref<8x48xf32, #tpu.memory_space<vmem>>, %arg5: memref<8x128xf32, #tpu.memory_space<vmem>>) attributes {dimension_semantics = [#tpu.dimension_semantics<parallel>], iteration_bounds = array<i64: 2>, scalar_prefetch = 0 : i64, scratch_operands = 0 : i64, tpu.core_type = #tpu.core_type<tc>, window_params = [{pipeline_mode = #tpu.pipeline_mode<synchronous>, transform_indices = @transform_0, window_bounds = array<i64: 40, 16>}, {transform_indices = @transform_1, window_bounds = array<i64: 8, 20>}, {pipeline_mode = #tpu.pipeline_mode<synchronous>, transform_indices = @transform_2, window_bounds = array<i64: 208, 48>}, {pipeline_mode = #tpu.pipeline_mode<synchronous>, transform_indices = @transform_3, window_bounds = array<i64: 8, 48>}, {transform_indices = @transform_4, window_bounds = array<i64: 8, 128>}]} {
    %c0 = arith.constant 0 : index
    %c0_0 = arith.constant 0 : index
    %0 = vector.load %arg4[%c0, %c0_0] : memref<8x48xf32, #tpu.memory_space<vmem>>, vector<8x48xf32>
    %1 = vector.extract_strided_slice %0 {offsets = [0, 0], sizes = [1, 16], strides = [1, 1]} : vector<8x48xf32> to vector<1x16xf32>
    %2 = vector.extract_strided_slice %0 {offsets = [1, 0], sizes = [1, 16], strides = [1, 1]} : vector<8x48xf32> to vector<1x16xf32>
    %3 = vector.extract_strided_slice %0 {offsets = [2, 0], sizes = [1, 16], strides = [1, 1]} : vector<8x48xf32> to vector<1x16xf32>
    %4 = vector.extract_strided_slice %0 {offsets = [3, 0], sizes = [1, 48], strides = [1, 1]} : vector<8x48xf32> to vector<1x48xf32>
    %5 = vector.extract_strided_slice %0 {offsets = [4, 0], sizes = [1, 3], strides = [1, 1]} : vector<8x48xf32> to vector<1x3xf32>
    %6 = vector.extract_strided_slice %0 {offsets = [5, 0], sizes = [1, 32], strides = [1, 1]} : vector<8x48xf32> to vector<1x32xf32>
    %7 = vector.extract_strided_slice %0 {offsets = [6, 0], sizes = [1, 19], strides = [1, 1]} : vector<8x48xf32> to vector<1x19xf32>
    %c0_1 = arith.constant 0 : index
    %c0_2 = arith.constant 0 : index
    %8 = vector.load %arg2[%c0_1, %c0_2] : memref<8x20xf32, #tpu.memory_space<vmem>>, vector<8x20xf32>
    %9 = vector.extract_strided_slice %8 {offsets = [0, 0], sizes = [8, 16], strides = [1, 1]} : vector<8x20xf32> to vector<8x16xf32>
    %10 = vector.extract_strided_slice %8 {offsets = [0, 19], sizes = [8, 1], strides = [1, 1]} : vector<8x20xf32> to vector<8x1xf32>
    %11 = vector.extract_strided_slice %8 {offsets = [0, 0], sizes = [8, 19], strides = [1, 1]} : vector<8x20xf32> to vector<8x19xf32>
    %c0_3 = arith.constant 0 : index
    %c0_4 = arith.constant 0 : index
    %12 = vector.load %arg1[%c0_3, %c0_4] : memref<40x16xi32, #tpu.memory_space<vmem>>, vector<32x1xi32>
    %c32 = arith.constant 32 : index
    %c0_5 = arith.constant 0 : index
    %13 = vector.load %arg1[%c32, %c0_5] : memref<40x16xi32, #tpu.memory_space<vmem>>, vector<1x16xi32>
    %14 = tpu.iota {dimensions = array<i32: 1>} : vector<32x8xi32>
    %15 = vector.broadcast %12 : vector<32x1xi32> to vector<32x8xi32>
    %16 = arith.cmpi eq, %14, %15 : vector<32x8xi32>
    %17 = arith.extui %16 : vector<32x8xi1> to vector<32x8xi32>
    %18 = arith.sitofp %17 : vector<32x8xi32> to vector<32x8xf32>
    %19 = tpu.iota {dimensions = array<i32: 0>} : vector<8x16xi32>
    %20 = vector.broadcast %13 : vector<1x16xi32> to vector<8x16xi32>
    %21 = arith.cmpi eq, %19, %20 : vector<8x16xi32>
    %22 = arith.extui %21 : vector<8x16xi1> to vector<8x16xi32>
    %23 = arith.sitofp %22 : vector<8x16xi32> to vector<8x16xf32>
    %cst = arith.constant dense<0.000000e+00> : vector<32x19xf32>
    %24 = tpu.matmul %18, %11, %cst {dimension_numbers = #tpu.dot_dimension_numbers<[1], [0], [0], [1], [0, 0, 1, 1], [], []>} : vector<32x8xf32>, vector<8x19xf32>, vector<32x19xf32> -> vector<32x19xf32>
    %25 = vector.extract_strided_slice %24 {offsets = [0, 0], sizes = [16, 16], strides = [1, 1]} : vector<32x19xf32> to vector<16x16xf32>
    %26 = vector.extract_strided_slice %24 {offsets = [0, 16], sizes = [16, 3], strides = [1, 1]} : vector<32x19xf32> to vector<16x3xf32>
    %27 = vector.extract_strided_slice %24 {offsets = [16, 0], sizes = [16, 16], strides = [1, 1]} : vector<32x19xf32> to vector<16x16xf32>
    %28 = vector.extract_strided_slice %24 {offsets = [16, 16], sizes = [16, 3], strides = [1, 1]} : vector<32x19xf32> to vector<16x3xf32>
    %29 = arith.subf %26, %28 : vector<16x3xf32>
    %30 = arith.mulf %29, %29 : vector<16x3xf32>
    %cst_6 = arith.constant dense<0.000000e+00> : vector<16xf32>
    %31 = vector.multi_reduction <add>, %30, %cst_6 [1] : vector<16x3xf32> to vector<16xf32>
    %32 = vector.shape_cast %31 : vector<16xf32> to vector<16x1xf32>
    %33 = math.rsqrt %32 : vector<16x1xf32>
    %34 = vector.broadcast %33 : vector<16x1xf32> to vector<16x3xf32>
    %35 = arith.mulf %29, %34 : vector<16x3xf32>
    %36 = tpu.concatenate %25, %27 in 1 : vector<16x16xf32>, vector<16x16xf32> -> vector<16x32xf32>
    %c0_7 = arith.constant 0 : index
    %c0_8 = arith.constant 0 : index
    %37 = vector.load %arg3[%c0_7, %c0_8] : memref<208x48xf32, #tpu.memory_space<vmem>>, vector<32x16xf32>
    %cst_9 = arith.constant dense<0.000000e+00> : vector<16x16xf32>
    %38 = tpu.matmul %36, %37, %cst_9 {dimension_numbers = #tpu.dot_dimension_numbers<[1], [0], [0], [1], [0, 0, 1, 1], [], []>} : vector<16x32xf32>, vector<32x16xf32>, vector<16x16xf32> -> vector<16x16xf32>
    %39 = vector.broadcast %32 : vector<16x1xf32> to vector<16x16xf32>
    %40 = vector.broadcast %1 : vector<1x16xf32> to vector<16x16xf32>
    %41 = arith.mulf %39, %40 : vector<16x16xf32>
    %42 = arith.addf %38, %41 : vector<16x16xf32>
    %43 = vector.broadcast %2 : vector<1x16xf32> to vector<16x16xf32>
    %44 = arith.addf %42, %43 : vector<16x16xf32>
    %45 = arith.negf %44 : vector<16x16xf32>
    %46 = math.exp %45 : vector<16x16xf32>
    %cst_10 = arith.constant 1.000000e+00 : f32
    %47 = vector.broadcast %cst_10 : f32 to vector<16x16xf32>
    %48 = arith.addf %47, %46 : vector<16x16xf32>
    %49 = arith.divf %47, %48 : vector<16x16xf32>
    %50 = arith.mulf %44, %49 : vector<16x16xf32>
    %c32_11 = arith.constant 32 : index
    %c0_12 = arith.constant 0 : index
    %51 = vector.load %arg3[%c32_11, %c0_12] : memref<208x48xf32, #tpu.memory_space<vmem>>, vector<16x16xf32>
    %cst_13 = arith.constant dense<0.000000e+00> : vector<16x16xf32>
    %52 = tpu.matmul %50, %51, %cst_13 {dimension_numbers = #tpu.dot_dimension_numbers<[1], [0], [0], [1], [0, 0, 1, 1], [], []>} : vector<16x16xf32>, vector<16x16xf32>, vector<16x16xf32> -> vector<16x16xf32>
    %53 = vector.broadcast %3 : vector<1x16xf32> to vector<16x16xf32>
    %54 = arith.addf %52, %53 : vector<16x16xf32>
    %55 = vector.extract_strided_slice %35 {offsets = [0, 0], sizes = [16, 1], strides = [1, 1]} : vector<16x3xf32> to vector<16x1xf32>
    %56 = vector.broadcast %55 : vector<16x1xf32> to vector<16x16xf32>
    %57 = arith.mulf %54, %56 : vector<16x16xf32>
    %58 = vector.extract_strided_slice %35 {offsets = [0, 1], sizes = [16, 1], strides = [1, 1]} : vector<16x3xf32> to vector<16x1xf32>
    %59 = vector.broadcast %58 : vector<16x1xf32> to vector<16x16xf32>
    %60 = arith.mulf %54, %59 : vector<16x16xf32>
    %61 = vector.extract_strided_slice %35 {offsets = [0, 2], sizes = [16, 1], strides = [1, 1]} : vector<16x3xf32> to vector<16x1xf32>
    %62 = vector.broadcast %61 : vector<16x1xf32> to vector<16x16xf32>
    %63 = arith.mulf %54, %62 : vector<16x16xf32>
    %64 = tpu.concatenate %57, %60, %63 in 1 : vector<16x16xf32>, vector<16x16xf32>, vector<16x16xf32> -> vector<16x48xf32>
    %cst_14 = arith.constant dense<0.000000e+00> : vector<8x48xf32>
    %65 = tpu.matmul %23, %64, %cst_14 {dimension_numbers = #tpu.dot_dimension_numbers<[1], [0], [0], [1], [0, 0, 1, 1], [], []>} : vector<8x16xf32>, vector<16x48xf32>, vector<8x48xf32> -> vector<8x48xf32>
    %66 = vector.broadcast %10 : vector<8x1xf32> to vector<8x48xf32>
    %67 = arith.mulf %65, %66 : vector<8x48xf32>
    %68 = vector.extract_strided_slice %67 {offsets = [0, 0], sizes = [8, 16], strides = [1, 1]} : vector<8x48xf32> to vector<8x16xf32>
    %69 = vector.extract_strided_slice %67 {offsets = [0, 16], sizes = [8, 16], strides = [1, 1]} : vector<8x48xf32> to vector<8x16xf32>
    %70 = vector.extract_strided_slice %67 {offsets = [0, 32], sizes = [8, 16], strides = [1, 1]} : vector<8x48xf32> to vector<8x16xf32>
    %71 = arith.mulf %68, %68 : vector<8x16xf32>
    %72 = arith.mulf %69, %69 : vector<8x16xf32>
    %73 = arith.addf %71, %72 : vector<8x16xf32>
    %74 = arith.mulf %70, %70 : vector<8x16xf32>
    %75 = arith.addf %73, %74 : vector<8x16xf32>
    %76 = math.sqrt %75 : vector<8x16xf32>
    %c48 = arith.constant 48 : index
    %c0_15 = arith.constant 0 : index
    %77 = vector.load %arg3[%c48, %c0_15] : memref<208x48xf32, #tpu.memory_space<vmem>>, vector<48x48xf32>
    %cst_16 = arith.constant dense<0.000000e+00> : vector<8x48xf32>
    %78 = tpu.matmul %67, %77, %cst_16 {dimension_numbers = #tpu.dot_dimension_numbers<[1], [0], [0], [1], [0, 0, 1, 1], [], []>} : vector<8x48xf32>, vector<48x48xf32>, vector<8x48xf32> -> vector<8x48xf32>
    %79 = vector.broadcast %4 : vector<1x48xf32> to vector<8x48xf32>
    %80 = arith.addf %78, %79 : vector<8x48xf32>
    %81 = arith.negf %80 : vector<8x48xf32>
    %82 = math.exp %81 : vector<8x48xf32>
    %cst_17 = arith.constant 1.000000e+00 : f32
    %83 = vector.broadcast %cst_17 : f32 to vector<8x48xf32>
    %84 = arith.addf %83, %82 : vector<8x48xf32>
    %85 = arith.divf %83, %84 : vector<8x48xf32>
    %86 = arith.mulf %80, %85 : vector<8x48xf32>
    %c96 = arith.constant 96 : index
    %c0_18 = arith.constant 0 : index
    %87 = vector.load %arg3[%c96, %c0_18] : memref<208x48xf32, #tpu.memory_space<vmem>>, vector<48x3xf32>
    %cst_19 = arith.constant dense<0.000000e+00> : vector<8x3xf32>
    %88 = tpu.matmul %86, %87, %cst_19 {dimension_numbers = #tpu.dot_dimension_numbers<[1], [0], [0], [1], [0, 0, 1, 1], [], []>} : vector<8x48xf32>, vector<48x3xf32>, vector<8x3xf32> -> vector<8x3xf32>
    %89 = vector.broadcast %5 : vector<1x3xf32> to vector<8x3xf32>
    %90 = arith.addf %88, %89 : vector<8x3xf32>
    %91 = tpu.concatenate %9, %76 in 1 : vector<8x16xf32>, vector<8x16xf32> -> vector<8x32xf32>
    %c144 = arith.constant 144 : index
    %c0_20 = arith.constant 0 : index
    %92 = vector.load %arg3[%c144, %c0_20] : memref<208x48xf32, #tpu.memory_space<vmem>>, vector<32x32xf32>
    %cst_21 = arith.constant dense<0.000000e+00> : vector<8x32xf32>
    %93 = tpu.matmul %91, %92, %cst_21 {dimension_numbers = #tpu.dot_dimension_numbers<[1], [0], [0], [1], [0, 0, 1, 1], [], []>} : vector<8x32xf32>, vector<32x32xf32>, vector<8x32xf32> -> vector<8x32xf32>
    %94 = vector.broadcast %6 : vector<1x32xf32> to vector<8x32xf32>
    %95 = arith.addf %93, %94 : vector<8x32xf32>
    %96 = arith.negf %95 : vector<8x32xf32>
    %97 = math.exp %96 : vector<8x32xf32>
    %cst_22 = arith.constant 1.000000e+00 : f32
    %98 = vector.broadcast %cst_22 : f32 to vector<8x32xf32>
    %99 = arith.addf %98, %97 : vector<8x32xf32>
    %100 = arith.divf %98, %99 : vector<8x32xf32>
    %101 = arith.mulf %95, %100 : vector<8x32xf32>
    %c176 = arith.constant 176 : index
    %c0_23 = arith.constant 0 : index
    %102 = vector.load %arg3[%c176, %c0_23] : memref<208x48xf32, #tpu.memory_space<vmem>>, vector<32x19xf32>
    %cst_24 = arith.constant dense<0.000000e+00> : vector<8x19xf32>
    %103 = tpu.matmul %101, %102, %cst_24 {dimension_numbers = #tpu.dot_dimension_numbers<[1], [0], [0], [1], [0, 0, 1, 1], [], []>} : vector<8x32xf32>, vector<32x19xf32>, vector<8x19xf32> -> vector<8x19xf32>
    %104 = vector.broadcast %7 : vector<1x19xf32> to vector<8x19xf32>
    %105 = arith.addf %103, %104 : vector<8x19xf32>
    %106 = vector.extract_strided_slice %105 {offsets = [0, 0], sizes = [8, 3], strides = [1, 1]} : vector<8x19xf32> to vector<8x3xf32>
    %107 = arith.addf %106, %90 : vector<8x3xf32>
    %108 = vector.extract_strided_slice %105 {offsets = [0, 3], sizes = [8, 16], strides = [1, 1]} : vector<8x19xf32> to vector<8x16xf32>
    %cst_25 = arith.constant 0.000000e+00 : f32
    %109 = vector.broadcast %cst_25 : f32 to vector<8x93xf32>
    %110 = tpu.concatenate %107, %108, %76, %109 in 1 : vector<8x3xf32>, vector<8x16xf32>, vector<8x16xf32>, vector<8x93xf32> -> vector<8x128xf32>
    %c0_26 = arith.constant 0 : index
    %c0_27 = arith.constant 0 : index
    %111 = vector.load %arg5[%c0_26, %c0_27] : memref<8x128xf32, #tpu.memory_space<vmem>>, vector<8x128xf32>
    tpu.vector_store %arg5[%c0_26, %c0_27], %110 {strides = array<i32>} : memref<8x128xf32, #tpu.memory_space<vmem>>, vector<8x128xf32>,
    return
  }
  func.func @transform_0(%arg0: i32) -> (i32, i32) {
    %c0_i32 = arith.constant 0 : i32
    %c0_i32_0 = arith.constant 0 : i32
    %c0_i32_1 = arith.constant 0 : i32
    return %c0_i32, %c0_i32_0 : i32, i32
  }
  func.func @transform_1(%arg0: i32) -> (i32, i32) {
    %c0_i32 = arith.constant 0 : i32
    %c0_i32_0 = arith.constant 0 : i32
    return %arg0, %c0_i32 : i32, i32
  }
  func.func @transform_2(%arg0: i32) -> (i32, i32) {
    %c0_i32 = arith.constant 0 : i32
    %c0_i32_0 = arith.constant 0 : i32
    %c0_i32_1 = arith.constant 0 : i32
    return %c0_i32, %c0_i32_0 : i32, i32
  }
  func.func @transform_3(%arg0: i32) -> (i32, i32) {
    %c0_i32 = arith.constant 0 : i32
    %c0_i32_0 = arith.constant 0 : i32
    %c0_i32_1 = arith.constant 0 : i32
    return %c0_i32, %c0_i32_0 : i32, i32
  }
  func.func @transform_4(%arg0: i32) -> (i32, i32) {
    %c0_i32 = arith.constant 0 : i32
    %c0_i32_0 = arith.constant 0 : i32
    return %arg0, %c0_i32 : i32, i32
  }
}

</mosaic_0001>

<llo_original>
// kernel: tpu_custom_call.1
$region0: #{tpu_custom_call.1}
  #allocation0 [shape = 'u32[]', space=smem, size = 0x4, offset = 0x4, fixed_abs, tag = 'smem constant byte address 0x4 - core index']
  #allocation1 [shape = 'u32[144,128]{1,0:T(1,128)}', space=vmem, size = 0x12000, scoped, tag = 'internal scratch']
  %s0 = inlined_call_operand.vmem [shape: s32[40,16], index: 0, kind: input, shape index: {}]
  %s1 = inlined_call_operand.vmem [shape: f32[16,20], index: 1, kind: input, shape index: {}]
  %s2 = inlined_call_operand.vmem [shape: f32[208,48], index: 2, kind: input, shape index: {}]
  %s3 = inlined_call_operand.vmem [shape: f32[8,48], index: 3, kind: input, shape index: {}]
  %s4 = inlined_call_operand.hbm [shape: f32[16,128], index: 4, kind: output, shape index: {}]
  %s5 = sld [smem:[#allocation0]]
  $region49: #{tpu_custom_call.1} parent=0
    _
  %s7 = ssub.s32 1, %s5
  %s8 = scalar_select 0, %s7, %s5
  $region1: #{tpu_custom_call.1} parent=0
    #allocation2 [shape = 'u8[8192]{0}', space=vmem, size = 0x2000, scoped, tag = 'output window, operand 0']
    #allocation3 [shape = 's32[2]{0}', space=sflag, size = 0x8, scoped, tag = 'scoped memory for tpu_custom_call.1']
    %9 = vsyncpa [#allocation3], 0
    %s10 = scalar_lea.sflag [#allocation3], 1
    %11 = vsyncpa %s10, 0
    loop: start=0, step=1, limit=4
    $region2: #{tpu_custom_call.1} parent=1 // loop_pre_header
      _
    $region3: #{tpu_custom_call.1} parent=1 // loop_header
      %s13 = sphi 0, %s17
      %p14 = scmp.ge.s32.totalorder %s13, 4
      %s21 = sphi 0, %s21
      %s23 = sphi 0, %s21
      %s24 = sphi 0, %s23
      %s38 = sphi 0, %s24
      %s44 = sphi 0, %s46
      %s47 = sphi 0, %s44
      %s48 = sphi 0, %s47
      %s64 = sphi 0, %s48
      %s68 = sphi 0, %s68
      %s70 = sphi 0, %s68
      %s71 = sphi 0, %s70
      %s85 = sphi 0, %s71
      %s89 = sphi 0, %s89
      %s91 = sphi 0, %s89
      %s92 = sphi 0, %s91
      %s106 = sphi 0, %s92
      %s112 = sphi 0, %s114
      %s115 = sphi 0, %s112
      %s116 = sphi 0, %s115
      %s132 = sphi 0, %s116
    $region4: #{tpu_custom_call.1} parent=1 // loop_header_branch
      %16 = sbr.rel (%p14) target = $region8
    $region5: #{tpu_custom_call.1} parent=1 // loop_body
      %s18 = ssub.s32 %s13, 1
      %s19 = ssub.s32 %s13, 2
      %s20 = sadd.s32 %s13, 1
      %s22 = sadd.s32 %s21, 1
      %p25 = scmp.eq.s32.totalorder %s13, 1
      %p26 = scmp.ne.s32.totalorder %s21, %s23
      %p27 = scmp.eq.s32.totalorder %s13, 0
      %p28 = por %p26, %p27
      %p29 = scmp.ne.s32.totalorder %s21, %s23
      %p30 = scmp.eq.s32.totalorder %s18, 1
      %p31 = por %p29, %p30
      %p32 = scmp.ne.s32.totalorder %s23, %s24
      %p33 = scmp.eq.s32.totalorder %s18, 0
      %p34 = por %p32, %p33
      %p35 = scmp.ne.s32.totalorder %s23, %s24
      %p36 = scmp.eq.s32.totalorder %s19, 1
      %p37 = por %p35, %p36
      %p39 = scmp.ne.s32.totalorder %s24, %s38
      %p40 = scmp.eq.s32.totalorder %s19, 0
      %p41 = por %p39, %p40
      %s42 = ssub.s32 %s13, %s20
      %p43 = scmp.eq.s32.totalorder %s42, 0
      %s45 = sadd.s32 %s44, 1
      %s46 = scalar_select %p43, %s44, %s45
      %p49 = pneg %p43
      %p50 = scmp.eq.s32.totalorder %s13, 1
      %p51 = por %p49, %p50
      %p52 = scmp.ne.s32.totalorder %s44, %s47
      %p53 = scmp.eq.s32.totalorder %s13, 0
      %p54 = por %p52, %p53
      %p55 = scmp.ne.s32.totalorder %s44, %s47
      %p56 = scmp.eq.s32.totalorder %s18, 1
      %p57 = por %p55, %p56
      %p58 = scmp.ne.s32.totalorder %s47, %s48
      %p59 = scmp.eq.s32.totalorder %s18, 0
      %p60 = por %p58, %p59
      %p61 = scmp.ne.s32.totalorder %s47, %s48
      %p62 = scmp.eq.s32.totalorder %s19, 1
      %p63 = por %p61, %p62
      %p65 = scmp.ne.s32.totalorder %s48, %s64
      %p66 = scmp.eq.s32.totalorder %s19, 0
      %p67 = por %p65, %p66
      %s69 = sadd.s32 %s68, 1
      %p72 = scmp.eq.s32.totalorder %s13, 1
      %p73 = scmp.ne.s32.totalorder %s68, %s70
      %p74 = scmp.eq.s32.totalorder %s13, 0
      %p75 = por %p73, %p74
      %p76 = scmp.ne.s32.totalorder %s68, %s70
      %p77 = scmp.eq.s32.totalorder %s18, 1
      %p78 = por %p76, %p77
      %p79 = scmp.ne.s32.totalorder %s70, %s71
      %p80 = scmp.eq.s32.totalorder %s18, 0
      %p81 = por %p79, %p80
      %p82 = scmp.ne.s32.totalorder %s70, %s71
      %p83 = scmp.eq.s32.totalorder %s19, 1
      %p84 = por %p82, %p83
      %p86 = scmp.ne.s32.totalorder %s71, %s85
      %p87 = scmp.eq.s32.totalorder %s19, 0
      %p88 = por %p86, %p87
      %s90 = sadd.s32 %s89, 1
      %p93 = scmp.eq.s32.totalorder %s13, 1
      %p94 = scmp.ne.s32.totalorder %s89, %s91
      %p95 = scmp.eq.s32.totalorder %s13, 0
      %p96 = por %p94, %p95
      %p97 = scmp.ne.s32.totalorder %s89, %s91
      %p98 = scmp.eq.s32.totalorder %s18, 1
      %p99 = por %p97, %p98
      %p100 = scmp.ne.s32.totalorder %s91, %s92
      %p101 = scmp.eq.s32.totalorder %s18, 0
      %p102 = por %p100, %p101
      %p103 = scmp.ne.s32.totalorder %s91, %s92
      %p104 = scmp.eq.s32.totalorder %s19, 1
      %p105 = por %p103, %p104
      %p107 = scmp.ne.s32.totalorder %s92, %s106
      %p108 = scmp.eq.s32.totalorder %s19, 0
      %p109 = por %p107, %p108
      %s110 = ssub.s32 %s13, %s20
      %p111 = scmp.eq.s32.totalorder %s110, 0
      %s113 = sadd.s32 %s112, 1
      %s114 = scalar_select %p111, %s112, %s113
      %p117 = pneg %p111
      %p118 = scmp.eq.s32.totalorder %s13, 1
      %p119 = por %p117, %p118
      %p120 = scmp.ne.s32.totalorder %s112, %s115
      %p121 = scmp.eq.s32.totalorder %s13, 0
      %p122 = por %p120, %p121
      %p123 = scmp.ne.s32.totalorder %s112, %s115
      %p124 = scmp.eq.s32.totalorder %s18, 1
      %p125 = por %p123, %p124
      %p126 = scmp.ne.s32.totalorder %s115, %s116
      %p127 = scmp.eq.s32.totalorder %s18, 0
      %p128 = por %p126, %p127
      %p129 = scmp.ne.s32.totalorder %s115, %s116
      %p130 = scmp.eq.s32.totalorder %s19, 1
      %p131 = por %p129, %p130
      %p133 = scmp.ne.s32.totalorder %s116, %s132
      %p134 = scmp.eq.s32.totalorder %s19, 0
      %p135 = por %p133, %p134
      %p136 = scmp.le.s32.totalorder 1, %s13
      %p137 = scmp.lt.s32.totalorder %s13, 3
      %p138 = pnand %p136, %p137
      %p139 = pneg %p138
      // Predicated region
      $region9: #{tpu_custom_call.1} parent=5 // pred_check
        _
      $region10: #{tpu_custom_call.1} parent=5 // pred_check_branch
        %141 = sbr.rel (%p138) target = $region12
      $region11: #{tpu_custom_call.1} parent=5 // pred_region
        %s142 = ssub.s32 %s13, 1
        // Predicated region
        $region13: #{tpu_custom_call.1} parent=11 // pred_check
          %p143 = pneg %p34
        $region14: #{tpu_custom_call.1} parent=11 // pred_check_branch
          %145 = sbr.rel (%p143) target = $region16
        $region15: #{tpu_custom_call.1} parent=11 // pred_region
          _
        $region16: #{tpu_custom_call.1} parent=11 // pred_fallthru
          _
        // Predicated region
        $region17: #{tpu_custom_call.1} parent=11 // pred_check
          %p146 = pneg %p81
        $region18: #{tpu_custom_call.1} parent=11 // pred_check_branch
          %148 = sbr.rel (%p146) target = $region20
        $region19: #{tpu_custom_call.1} parent=11 // pred_region
          _
        $region20: #{tpu_custom_call.1} parent=11 // pred_fallthru
          _
        // Predicated region
        $region21: #{tpu_custom_call.1} parent=11 // pred_check
          %p149 = pneg %p102
        $region22: #{tpu_custom_call.1} parent=11 // pred_check_branch
          %151 = sbr.rel (%p149) target = $region24
        $region23: #{tpu_custom_call.1} parent=11 // pred_region
          _
        $region24: #{tpu_custom_call.1} parent=11 // pred_fallthru
          _
      $region12: #{tpu_custom_call.1} parent=5 // pred_fallthru
        _
      %p152 = scmp.lt.s32.totalorder %s13, 2
      // Predicated region
      $region25: #{tpu_custom_call.1} parent=5 // pred_check
        %p153 = pneg %p152
      $region26: #{tpu_custom_call.1} parent=5 // pred_check_branch
        %155 = sbr.rel (%p153) target = $region28
      $region27: #{tpu_custom_call.1} parent=5 // pred_region
        // Predicated region
        $region29: #{tpu_custom_call.1} parent=27 // pred_check
          %p156 = pneg %p54
        $region30: #{tpu_custom_call.1} parent=27 // pred_check_branch
          %158 = sbr.rel (%p156) target = $region32
        $region31: #{tpu_custom_call.1} parent=27 // pred_region
          %p159 = scmp.lt.s32.totalorder %s13, 1
          %s160 = scalar_select %p159, %s13, 1
          %s161 = smul.addr %s160, 8
          %s162 = scalar_lea.vmem %s1, %s161
        $region32: #{tpu_custom_call.1} parent=27 // pred_fallthru
          _
      $region28: #{tpu_custom_call.1} parent=5 // pred_fallthru
        _
      %p163 = scmp.le.s32.totalorder 1, %s13
      %p164 = scmp.lt.s32.totalorder %s13, 3
      %p165 = pnand %p163, %p164
      %p166 = pneg %p165
      // Predicated region
      $region33: #{tpu_custom_call.1} parent=5 // pred_check
        _
      $region34: #{tpu_custom_call.1} parent=5 // pred_check_branch
        %168 = sbr.rel (%p165) target = $region36
      $region35: #{tpu_custom_call.1} parent=5 // pred_region
        %s169 = ssub.s32 %s13, 1
        %p170 = pneg %p34
        %p171 = pneg %p31
        %p172 = scmp.lt.s32.totalorder %s18, 1
        %s173 = scalar_select %p172, %s18, 1
        %s174 = smul.addr %s173, 8
        %s175 = scalar_lea.vmem %s1, %s174
        %p176 = pneg %p60
        %p177 = pneg %p57
        %p178 = pneg %p81
        %p179 = pneg %p78
        %p180 = pneg %p102
        %p181 = pneg %p99
        %p182 = pneg %p128
        %p183 = pneg %p125
        %s184 = sand.u32 %s115, 1
        %s185 = scalar_lea.sflag [#allocation3], %s184
        %s186 = sand.u32 %s115, 1
        %s187 = smul.addr %s186, 8
        %s188 = scalar_lea.vmem [#allocation2], %s187
        %p189 = scmp.lt.s32.totalorder %s18, 1
        %s190 = scalar_select %p189, %s18, 1
        %s191 = smul.addr %s190, 8
        %s192 = scalar_lea.vmem %s1, %s191
        %v193 = vld [vmem:[%s3] sm:$0xff]
        %v194 = vld [vmem:[%s192] sm:$0xff]
        %v195 = vld [vmem:[%s0] sm:$0xff]
        %v196 = vld [vmem:[%s0 + $0x8] sm:$0xff]
        %v197 = vld [vmem:[%s0 + $0x10] sm:$0xff]
        %v198 = vld [vmem:[%s0 + $0x18] sm:$0xff]
        %v199 = vld [vmem:[%s0 + $0x20] sm:$0x1]
        %v200 = vlaneseq
        %v201 = vand.u32 %v200, 127
        %202 = vset.pattern.permute.xlu0 0
        %203 = vperm.xlu0 %202, %v195
        %v204 = vpop.permute.xlu0 %203
        %205 = vset.pattern.permute.xlu0 0
        %206 = vperm.xlu0 %205, %v196
        %v207 = vpop.permute.xlu0 %206
        %208 = vset.pattern.permute.xlu0 0
        %209 = vperm.xlu0 %208, %v197
        %v210 = vpop.permute.xlu0 %209
        %211 = vset.pattern.permute.xlu0 0
        %212 = vperm.xlu0 %211, %v198
        %v213 = vpop.permute.xlu0 %212
        %vm214 = vcmp.eq.s32.totalorder %v201, %v204
        %vm215 = vcmp.eq.s32.totalorder %v201, %v207
        %vm216 = vcmp.eq.s32.totalorder %v201, %v210
        %vm217 = vcmp.eq.s32.totalorder %v201, %v213
        %v218 = vsel %vm214, 1, 0
        %v219 = vsel %vm215, 1, 0
        %v220 = vsel %vm216, 1, 0
        %v221 = vsel %vm217, 1, 0
        %v222 = vcvt.s32.f32 %v218
        %v223 = vcvt.s32.f32 %v219
        %v224 = vcvt.s32.f32 %v220
        %v225 = vcvt.s32.f32 %v221
        %v226 = vlaneseq
        %v227 = vshrl.u32 %v226, 7
        %v228 = vlaneseq
        %v229 = vshrl.u32 %v228, 7
        %v230 = vsub.s32 0, %v229
        %v231 = vrot.slane %v199, %v230
        %vm232 = vcmp.eq.s32.totalorder %v227, %v231
        %v233 = vsel %vm232, 1, 0
        %v234 = vcvt.s32.f32 %v233
        %vm235 = vcmask 64512
        %v237 = vsel %vm235, %v222, 0
        %v240 = vsel %vm235, %v223, 0
        %v243 = vsel %vm235, %v224, 0
        %v246 = vsel %vm235, %v225, 0
        %248 = vmatprep.subr.mxu0 0.0
        %249 = vmatpush1.msra.mxu0 0.0
        %250 = vmatprep.subr.mxu0 0.0
        %251 = vmatpush1.msra.mxu0 0.0
        %252 = vmatprep.subr.mxu0 0.0
        %253 = vmatpush1.msra.mxu0 0.0
        %254 = vmatprep.subr.mxu0 0.0
        %255 = vmatpush1.msra.mxu0 0.0
        %256 = vmatprep.subr.mxu0 0.0
        %257 = vmatpush1.msra.mxu0 0.0
        %258 = vmatprep.subr.mxu0 0.0
        %259 = vmatpush1.msra.mxu0 0.0
        %260 = vmatprep.subr.mxu0 0.0
        %261 = vmatpush1.msra.mxu0 0.0
        %262 = vmatprep.subr.mxu0 0.0
        %263 = vmatpush1.msra.mxu0 0.0
        %264 = vmatprep.subr.mxu0 0.0
        %265 = vmatpush1.msra.mxu0 0.0
        %266 = vmatprep.subr.mxu0 0.0
        %267 = vmatpush1.msra.mxu0 0.0
        %268 = vmatprep.subr.mxu0 0.0
        %269 = vmatpush1.msra.mxu0 0.0
        %270 = vmatprep.subr.mxu0 0.0
        %271 = vmatpush1.msra.mxu0 0.0
        %272 = vmatprep.subr.mxu0 0.0
        %273 = vmatpush1.msra.mxu0 0.0
        %274 = vmatprep.subr.mxu0 0.0
        %275 = vmatpush1.msra.mxu0 0.0
        %276 = vmatprep.subr.mxu0 0.0
        %277 = vmatpush1.msra.mxu0 0.0
        %278 = vmatprep.subr.mxu0 0.0
        %279 = vmatpush1.msra.mxu0 %v194
        %280 = vmatprep.subr.mxu0 0.0
        %281 = vmatpush2.msra.mxu0 0.0
        %282 = vmatprep.subr.mxu0 0.0
        %283 = vmatpush2.msra.mxu0 0.0
        %284 = vmatprep.subr.mxu0 0.0
        %285 = vmatpush2.msra.mxu0 0.0
        %286 = vmatprep.subr.mxu0 0.0
        %287 = vmatpush2.msra.mxu0 0.0
        %288 = vmatprep.subr.mxu0 0.0
        %289 = vmatpush2.msra.mxu0 0.0
        %290 = vmatprep.subr.mxu0 0.0
        %291 = vmatpush2.msra.mxu0 0.0
        %292 = vmatprep.subr.mxu0 0.0
        %293 = vmatpush2.msra.mxu0 0.0
        %294 = vmatprep.subr.mxu0 0.0
        %295 = vmatpush2.msra.mxu0 0.0
        %296 = vmatprep.subr.mxu0 0.0
        %297 = vmatpush2.msra.mxu0 0.0
        %298 = vmatprep.subr.mxu0 0.0
        %299 = vmatpush2.msra.mxu0 0.0
        %300 = vmatprep.subr.mxu0 0.0
        %301 = vmatpush2.msra.mxu0 0.0
        %302 = vmatprep.subr.mxu0 0.0
        %303 = vmatpush2.msra.mxu0 0.0
        %304 = vmatprep.subr.mxu0 0.0
        %305 = vmatpush2.msra.mxu0 0.0
        %306 = vmatprep.subr.mxu0 0.0
        %307 = vmatpush2.msra.mxu0 0.0
        %308 = vmatprep.subr.mxu0 0.0
        %309 = vmatpush2.msra.mxu0 0.0
        %310 = vmatprep.subr.mxu0 0.0
        %311 = vmatpush2.msra.mxu0 0.0
        %312 = vmatprep.mubr.f32.mxu0 0.0
        %313 = vmatmul.mubr.f32.gmra.mxu0 %v237
        %v314 = vpop.f32.mrf.mxu0
        %v315 = vadd.f32 0.0, %v314
        %v316 = vpop.f32.mrf.mxu0
        %317 = vmatprep.mubr.f32.mxu0 0.0
        %318 = vmatmul.mubr.f32.gmra.mxu0 %v240
        %v319 = vpop.f32.mrf.mxu0
        %v320 = vadd.f32 0.0, %v319
        %v321 = vpop.f32.mrf.mxu0
        %322 = vmatprep.mubr.f32.mxu0 0.0
        %323 = vmatmul.mubr.f32.gmra.mxu0 %v243
        %v324 = vpop.f32.mrf.mxu0
        %v325 = vadd.f32 0.0, %v324
        %v326 = vpop.f32.mrf.mxu0
        %327 = vmatprep.mubr.f32.mxu0 0.0
        %328 = vmatmul.mubr.f32.gmra.mxu0 %v246
        %v329 = vpop.f32.mrf.mxu0
        %v330 = vadd.f32 0.0, %v329
        %v331 = vpop.f32.mrf.mxu0
        %332 = vdwg.mxu0
        %v333 = vsub.f32 %v315, %v325
        %v334 = vsub.f32 %v320, %v330
        %v335 = vmul.f32 %v333, %v333
        %v336 = vmul.f32 %v334, %v334
        %339 = vrot.lane.b32.xlu0 %v335, 112
        %v340 = vpop.permute.xlu0 %339
        %341 = vrot.lane.b32.xlu0 %v336, 112
        %v342 = vpop.permute.xlu0 %341
        %vm345 = vcmask 23552
        %v346 = vsel %vm345, %v340, 0.0
        %347 = vadd.xlane.f32.xlu0 %v346
        %v348 = vpop.xlane.xlu0 %347
        %v349 = vsel %vm345, %v342, 0.0
        %350 = vadd.xlane.f32.xlu0 %v349
        %v351 = vpop.xlane.xlu0 %350
        %v352 = vrsqrt.pop %v348
        %v353 = vrsqrt.pop %v351
        %v354 = vmul.f32 %v333, %v352
        %v355 = vmul.f32 %v334, %v353
        %358 = vrot.lane.b32.xlu0 %v325, 16
        %v359 = vpop.permute.xlu0 %358
        %360 = vrot.lane.b32.xlu0 %v330, 16
        %v361 = vpop.permute.xlu0 %360
        %vm364 = vcmask 130048
        %v365 = vsel %vm364, %v315, %v359
        %v366 = vsel %vm364, %v320, %v361
        %v367 = vld [vmem:[%s2] sm:$0xff]
        %v368 = vld [vmem:[%s2 + $0x8] sm:$0xff]
        %v369 = vld [vmem:[%s2 + $0x10] sm:$0xff]
        %v370 = vld [vmem:[%s2 + $0x18] sm:$0xff]
        %v371 = vlaneseq
        %v372 = vshrl.u32 %v371, 7
        %v373 = vsub.s32 0, %v372
        %v374 = vrot.slane %v193, %v373
        %v375 = vmul.f32 %v348, %v374
        %v376 = vmul.f32 %v351, %v374
        %vm377 = vcmask 261120
        %v379 = vsel %vm377, %v365, 0
        %v382 = vsel %vm377, %v366, 0
        %384 = vmatprep.subr.mxu0 0.0
        %385 = vmatpush1.msra.mxu0 0.0
        %386 = vmatprep.subr.mxu0 0.0
        %387 = vmatpush1.msra.mxu0 0.0
        %388 = vmatprep.subr.mxu0 0.0
        %389 = vmatpush1.msra.mxu0 0.0
        %390 = vmatprep.subr.mxu0 0.0
        %391 = vmatpush1.msra.mxu0 0.0
        %392 = vmatprep.subr.mxu0 0.0
        %393 = vmatpush1.msra.mxu0 0.0
        %394 = vmatprep.subr.mxu0 0.0
        %395 = vmatpush1.msra.mxu0 0.0
        %396 = vmatprep.subr.mxu0 0.0
        %397 = vmatpush1.msra.mxu0 0.0
        %398 = vmatprep.subr.mxu0 0.0
        %399 = vmatpush1.msra.mxu0 0.0
        %400 = vmatprep.subr.mxu0 0.0
        %401 = vmatpush1.msra.mxu0 0.0
        %402 = vmatprep.subr.mxu0 0.0
        %403 = vmatpush1.msra.mxu0 0.0
        %404 = vmatprep.subr.mxu0 0.0
        %405 = vmatpush1.msra.mxu0 0.0
        %406 = vmatprep.subr.mxu0 0.0
        %407 = vmatpush1.msra.mxu0 0.0
        %408 = vmatprep.subr.mxu0 0.0
        %409 = vmatpush1.msra.mxu0 %v370
        %410 = vmatprep.subr.mxu0 0.0
        %411 = vmatpush1.msra.mxu0 %v369
        %412 = vmatprep.subr.mxu0 0.0
        %413 = vmatpush1.msra.mxu0 %v368
        %414 = vmatprep.subr.mxu0 0.0
        %415 = vmatpush1.msra.mxu0 %v367
        %416 = vmatprep.subr.mxu0 0.0
        %417 = vmatpush2.msra.mxu0 0.0
        %418 = vmatprep.subr.mxu0 0.0
        %419 = vmatpush2.msra.mxu0 0.0
        %420 = vmatprep.subr.mxu0 0.0
        %421 = vmatpush2.msra.mxu0 0.0
        %422 = vmatprep.subr.mxu0 0.0
        %423 = vmatpush2.msra.mxu0 0.0
        %424 = vmatprep.subr.mxu0 0.0
        %425 = vmatpush2.msra.mxu0 0.0
        %426 = vmatprep.subr.mxu0 0.0
        %427 = vmatpush2.msra.mxu0 0.0
        %428 = vmatprep.subr.mxu0 0.0
        %429 = vmatpush2.msra.mxu0 0.0
        %430 = vmatprep.subr.mxu0 0.0
        %431 = vmatpush2.msra.mxu0 0.0
        %432 = vmatprep.subr.mxu0 0.0
        %433 = vmatpush2.msra.mxu0 0.0
        %434 = vmatprep.subr.mxu0 0.0
        %435 = vmatpush2.msra.mxu0 0.0
        %436 = vmatprep.subr.mxu0 0.0
        %437 = vmatpush2.msra.mxu0 0.0
        %438 = vmatprep.subr.mxu0 0.0
        %439 = vmatpush2.msra.mxu0 0.0
        %440 = vmatprep.subr.mxu0 0.0
        %441 = vmatpush2.msra.mxu0 0.0
        %442 = vmatprep.subr.mxu0 0.0
        %443 = vmatpush2.msra.mxu0 0.0
        %444 = vmatprep.subr.mxu0 0.0
        %445 = vmatpush2.msra.mxu0 0.0
        %446 = vmatprep.subr.mxu0 0.0
        %447 = vmatpush2.msra.mxu0 0.0
        %448 = vmatprep.mubr.f32.mxu0 0.0
        %449 = vmatmul.mubr.f32.gmra.mxu0 %v379
        %v450 = vpop.f32.mrf.mxu0
        %v451 = vadd.f32 %v375, %v450
        %v452 = vpop.f32.mrf.mxu0
        %453 = vmatprep.mubr.f32.mxu0 0.0
        %454 = vmatmul.mubr.f32.gmra.mxu0 %v382
        %v455 = vpop.f32.mrf.mxu0
        %v456 = vadd.f32 %v376, %v455
        %v457 = vpop.f32.mrf.mxu0
        %458 = vdwg.mxu0
        %v459 = vlaneseq
        %v460 = vshrl.u32 %v459, 7
        %v461 = vsub.s32 1, %v460
        %v462 = vrot.slane %v193, %v461
        %v463 = vadd.f32 %v451, %v462
        %v464 = vadd.f32 %v456, %v462
        %v465 = vxor.u32 %v463, 2147483648
        %v466 = vxor.u32 %v464, 2147483648
        %v467 = vmul.f32 %v465, 1.442695
        %v468 = vpow.pop %v467
        %v469 = vmul.f32 %v466, 1.442695
        %v470 = vpow.pop %v469
        %v471 = vadd.f32 %v468, 1.0
        %v472 = vadd.f32 %v470, 1.0
        %v473 = vrcp.pop %v471
        %v474 = vmul.f32 1.0, %v473
        %v475 = vrcp.pop %v472
        %v476 = vmul.f32 1.0, %v475
        %v477 = vmul.f32 %v463, %v474
        %v478 = vmul.f32 %v464, %v476
        %v479 = vld [vmem:[%s2 + $0x20] sm:$0xff]
        %v480 = vld [vmem:[%s2 + $0x28] sm:$0xff]
        %v481 = vlaneseq
        %v482 = vshrl.u32 %v481, 7
        %v483 = vsub.s32 2, %v482
        %v484 = vrot.slane %v193, %v483
        %v486 = vsel %vm364, %v477, 0
        %v489 = vsel %vm364, %v478, 0
        %491 = vmatprep.subr.mxu0 0.0
        %492 = vmatpush1.msra.mxu0 0.0
        %493 = vmatprep.subr.mxu0 0.0
        %494 = vmatpush1.msra.mxu0 0.0
        %495 = vmatprep.subr.mxu0 0.0
        %496 = vmatpush1.msra.mxu0 0.0
        %497 = vmatprep.subr.mxu0 0.0
        %498 = vmatpush1.msra.mxu0 0.0
        %499 = vmatprep.subr.mxu0 0.0
        %500 = vmatpush1.msra.mxu0 0.0
        %501 = vmatprep.subr.mxu0 0.0
        %502 = vmatpush1.msra.mxu0 0.0
        %503 = vmatprep.subr.mxu0 0.0
        %504 = vmatpush1.msra.mxu0 0.0
        %505 = vmatprep.subr.mxu0 0.0
        %506 = vmatpush1.msra.mxu0 0.0
        %507 = vmatprep.subr.mxu0 0.0
        %508 = vmatpush1.msra.mxu0 0.0
        %509 = vmatprep.subr.mxu0 0.0
        %510 = vmatpush1.msra.mxu0 0.0
        %511 = vmatprep.subr.mxu0 0.0
        %512 = vmatpush1.msra.mxu0 0.0
        %513 = vmatprep.subr.mxu0 0.0
        %514 = vmatpush1.msra.mxu0 0.0
        %515 = vmatprep.subr.mxu0 0.0
        %516 = vmatpush1.msra.mxu0 0.0
        %517 = vmatprep.subr.mxu0 0.0
        %518 = vmatpush1.msra.mxu0 0.0
        %519 = vmatprep.subr.mxu0 0.0
        %520 = vmatpush1.msra.mxu0 %v480
        %521 = vmatprep.subr.mxu0 0.0
        %522 = vmatpush1.msra.mxu0 %v479
        %523 = vmatprep.subr.mxu0 0.0
        %524 = vmatpush2.msra.mxu0 0.0
        %525 = vmatprep.subr.mxu0 0.0
        %526 = vmatpush2.msra.mxu0 0.0
        %527 = vmatprep.subr.mxu0 0.0
        %528 = vmatpush2.msra.mxu0 0.0
        %529 = vmatprep.subr.mxu0 0.0
        %530 = vmatpush2.msra.mxu0 0.0
        %531 = vmatprep.subr.mxu0 0.0
        %532 = vmatpush2.msra.mxu0 0.0
        %533 = vmatprep.subr.mxu0 0.0
        %534 = vmatpush2.msra.mxu0 0.0
        %535 = vmatprep.subr.mxu0 0.0
        %536 = vmatpush2.msra.mxu0 0.0
        %537 = vmatprep.subr.mxu0 0.0
        %538 = vmatpush2.msra.mxu0 0.0
        %539 = vmatprep.subr.mxu0 0.0
        %540 = vmatpush2.msra.mxu0 0.0
        %541 = vmatprep.subr.mxu0 0.0
        %542 = vmatpush2.msra.mxu0 0.0
        %543 = vmatprep.subr.mxu0 0.0
        %544 = vmatpush2.msra.mxu0 0.0
        %545 = vmatprep.subr.mxu0 0.0
        %546 = vmatpush2.msra.mxu0 0.0
        %547 = vmatprep.subr.mxu0 0.0
        %548 = vmatpush2.msra.mxu0 0.0
        %549 = vmatprep.subr.mxu0 0.0
        %550 = vmatpush2.msra.mxu0 0.0
        %551 = vmatprep.subr.mxu0 0.0
        %552 = vmatpush2.msra.mxu0 0.0
        %553 = vmatprep.subr.mxu0 0.0
        %554 = vmatpush2.msra.mxu0 0.0
        %555 = vmatprep.mubr.f32.mxu0 0.0
        %556 = vmatmul.mubr.f32.gmra.mxu0 %v486
        %v557 = vpop.f32.mrf.mxu0
        %v558 = vadd.f32 %v484, %v557
        %v559 = vpop.f32.mrf.mxu0
        %560 = vmatprep.mubr.f32.mxu0 0.0
        %561 = vmatmul.mubr.f32.gmra.mxu0 %v489
        %v562 = vpop.f32.mrf.mxu0
        %v563 = vadd.f32 %v484, %v562
        %v564 = vpop.f32.mrf.mxu0
        %565 = vdwg.mxu0
        %567 = vset.pattern.permute.xlu0 16
        %568 = vperm.xlu0 %567, %v354
        %v569 = vpop.permute.xlu0 %568
        %572 = vset.pattern.permute.xlu0 16
        %573 = vperm.xlu0 %572, %v355
        %v574 = vpop.permute.xlu0 %573
        %v576 = vmul.f32 %v558, %v569
        %v577 = vmul.f32 %v563, %v574
        %578 = vset.pattern.permute.xlu0 17
        %579 = vperm.xlu0 %578, %v354
        %v580 = vpop.permute.xlu0 %579
        %582 = vset.pattern.permute.xlu0 17
        %583 = vperm.xlu0 %582, %v355
        %v584 = vpop.permute.xlu0 %583
        %v586 = vmul.f32 %v558, %v580
        %v587 = vmul.f32 %v563, %v584
        %588 = vset.pattern.permute.xlu0 18
        %589 = vperm.xlu0 %588, %v354
        %v590 = vpop.permute.xlu0 %589
        %592 = vset.pattern.permute.xlu0 18
        %593 = vperm.xlu0 %592, %v355
        %v594 = vpop.permute.xlu0 %593
        %v596 = vmul.f32 %v558, %v590
        %v597 = vmul.f32 %v563, %v594
        %600 = vrot.lane.b32.xlu0 %v586, 16
        %v601 = vpop.permute.xlu0 %600
        %602 = vrot.lane.b32.xlu0 %v587, 16
        %v603 = vpop.permute.xlu0 %602
        %608 = vrot.lane.b32.xlu0 %v596, 32
        %v609 = vpop.permute.xlu0 %608
        %610 = vrot.lane.b32.xlu0 %v597, 32
        %v611 = vpop.permute.xlu0 %610
        %v614 = vsel %vm364, %v576, %v601
        %v615 = vsel %vm364, %v577, %v603
        %v616 = vsel %vm377, %v614, %v609
        %v617 = vsel %vm377, %v615, %v611
        %v619 = vsel %vm364, %v234, 0
        %621 = vmatprep.subr.mxu0 0.0
        %622 = vmatpush1.msra.mxu0 0.0
        %623 = vmatprep.subr.mxu0 0.0
        %624 = vmatpush1.msra.mxu0 0.0
        %625 = vmatprep.subr.mxu0 0.0
        %626 = vmatpush1.msra.mxu0 0.0
        %627 = vmatprep.subr.mxu0 0.0
        %628 = vmatpush1.msra.mxu0 0.0
        %629 = vmatprep.subr.mxu0 0.0
        %630 = vmatpush1.msra.mxu0 0.0
        %631 = vmatprep.subr.mxu0 0.0
        %632 = vmatpush1.msra.mxu0 0.0
        %633 = vmatprep.subr.mxu0 0.0
        %634 = vmatpush1.msra.mxu0 0.0
        %635 = vmatprep.subr.mxu0 0.0
        %636 = vmatpush1.msra.mxu0 0.0
        %637 = vmatprep.subr.mxu0 0.0
        %638 = vmatpush1.msra.mxu0 0.0
        %639 = vmatprep.subr.mxu0 0.0
        %640 = vmatpush1.msra.mxu0 0.0
        %641 = vmatprep.subr.mxu0 0.0
        %642 = vmatpush1.msra.mxu0 0.0
        %643 = vmatprep.subr.mxu0 0.0
        %644 = vmatpush1.msra.mxu0 0.0
        %645 = vmatprep.subr.mxu0 0.0
        %646 = vmatpush1.msra.mxu0 0.0
        %647 = vmatprep.subr.mxu0 0.0
        %648 = vmatpush1.msra.mxu0 0.0
        %649 = vmatprep.subr.mxu0 0.0
        %650 = vmatpush1.msra.mxu0 %v617
        %651 = vmatprep.subr.mxu0 0.0
        %652 = vmatpush1.msra.mxu0 %v616
        %653 = vmatprep.subr.mxu0 0.0
        %654 = vmatpush2.msra.mxu0 0.0
        %655 = vmatprep.subr.mxu0 0.0
        %656 = vmatpush2.msra.mxu0 0.0
        %657 = vmatprep.subr.mxu0 0.0
        %658 = vmatpush2.msra.mxu0 0.0
        %659 = vmatprep.subr.mxu0 0.0
        %660 = vmatpush2.msra.mxu0 0.0
        %661 = vmatprep.subr.mxu0 0.0
        %662 = vmatpush2.msra.mxu0 0.0
        %663 = vmatprep.subr.mxu0 0.0
        %664 = vmatpush2.msra.mxu0 0.0
        %665 = vmatprep.subr.mxu0 0.0
        %666 = vmatpush2.msra.mxu0 0.0
        %667 = vmatprep.subr.mxu0 0.0
        %668 = vmatpush2.msra.mxu0 0.0
        %669 = vmatprep.subr.mxu0 0.0
        %670 = vmatpush2.msra.mxu0 0.0
        %671 = vmatprep.subr.mxu0 0.0
        %672 = vmatpush2.msra.mxu0 0.0
        %673 = vmatprep.subr.mxu0 0.0
        %674 = vmatpush2.msra.mxu0 0.0
        %675 = vmatprep.subr.mxu0 0.0
        %676 = vmatpush2.msra.mxu0 0.0
        %677 = vmatprep.subr.mxu0 0.0
        %678 = vmatpush2.msra.mxu0 0.0
        %679 = vmatprep.subr.mxu0 0.0
        %680 = vmatpush2.msra.mxu0 0.0
        %681 = vmatprep.subr.mxu0 0.0
        %682 = vmatpush2.msra.mxu0 0.0
        %683 = vmatprep.subr.mxu0 0.0
        %684 = vmatpush2.msra.mxu0 0.0
        %685 = vmatprep.mubr.f32.mxu0 0.0
        %686 = vmatmul.mubr.f32.gmra.mxu0 %v619
        %v687 = vpop.f32.mrf.mxu0
        %v688 = vadd.f32 0.0, %v687
        %v689 = vpop.f32.mrf.mxu0
        %690 = vdwg.mxu0
        %692 = vset.pattern.permute.xlu0 19
        %693 = vperm.xlu0 %692, %v194
        %v694 = vpop.permute.xlu0 %693
        %v696 = vmul.f32 %v688, %v694
        %v697 = vmul.f32 %v696, %v696
        %699 = vrot.lane.b32.xlu0 %v697, 112
        %v700 = vpop.permute.xlu0 %699
        %v702 = vadd.f32 %v697, %v700
        %703 = vrot.lane.b32.xlu0 %v697, 96
        %v704 = vpop.permute.xlu0 %703
        %v706 = vadd.f32 %v702, %v704
        %v707 = vrsqrt.pop %v706
        %v708 = vmul.f32 %v706, %v707
        %vm709 = vcmp.eq.f32.partialorder %v706, inf
        %v710 = vsel %vm709, %v706, %v708
        %vm711 = vcmp.eq.f32.partialorder %v706, 0.0
        %v712 = vand.u32 %v706, 2147483648
        %v713 = vsel %vm711, %v712, %v710
        %v714 = vld [vmem:[%s2 + $0x30] sm:$0xff]
        %v715 = vld [vmem:[%s2 + $0x38] sm:$0xff]
        %v716 = vld [vmem:[%s2 + $0x40] sm:$0xff]
        %v717 = vld [vmem:[%s2 + $0x48] sm:$0xff]
        %v718 = vld [vmem:[%s2 + $0x50] sm:$0xff]
        %v719 = vld [vmem:[%s2 + $0x58] sm:$0xff]
        %v720 = vlaneseq
        %v721 = vshrl.u32 %v720, 7
        %v722 = vsub.s32 3, %v721
        %v723 = vrot.slane %v193, %v722
        %vm724 = vcmask 392192
        %v726 = vsel %vm724, %v696, 0
        %728 = vmatprep.subr.mxu0 0.0
        %729 = vmatpush1.msra.mxu0 0.0
        %730 = vmatprep.subr.mxu0 0.0
        %731 = vmatpush1.msra.mxu0 0.0
        %732 = vmatprep.subr.mxu0 0.0
        %733 = vmatpush1.msra.mxu0 0.0
        %734 = vmatprep.subr.mxu0 0.0
        %735 = vmatpush1.msra.mxu0 0.0
        %736 = vmatprep.subr.mxu0 0.0
        %737 = vmatpush1.msra.mxu0 0.0
        %738 = vmatprep.subr.mxu0 0.0
        %739 = vmatpush1.msra.mxu0 0.0
        %740 = vmatprep.subr.mxu0 0.0
        %741 = vmatpush1.msra.mxu0 0.0
        %742 = vmatprep.subr.mxu0 0.0
        %743 = vmatpush1.msra.mxu0 0.0
        %744 = vmatprep.subr.mxu0 0.0
        %745 = vmatpush1.msra.mxu0 0.0
        %746 = vmatprep.subr.mxu0 0.0
        %747 = vmatpush1.msra.mxu0 0.0
        %748 = vmatprep.subr.mxu0 0.0
        %749 = vmatpush1.msra.mxu0 %v719
        %750 = vmatprep.subr.mxu0 0.0
        %751 = vmatpush1.msra.mxu0 %v718
        %752 = vmatprep.subr.mxu0 0.0
        %753 = vmatpush1.msra.mxu0 %v717
        %754 = vmatprep.subr.mxu0 0.0
        %755 = vmatpush1.msra.mxu0 %v716
        %756 = vmatprep.subr.mxu0 0.0
        %757 = vmatpush1.msra.mxu0 %v715
        %758 = vmatprep.subr.mxu0 0.0
        %759 = vmatpush1.msra.mxu0 %v714
        %760 = vmatprep.subr.mxu0 0.0
        %761 = vmatpush2.msra.mxu0 0.0
        %762 = vmatprep.subr.mxu0 0.0
        %763 = vmatpush2.msra.mxu0 0.0
        %764 = vmatprep.subr.mxu0 0.0
        %765 = vmatpush2.msra.mxu0 0.0
        %766 = vmatprep.subr.mxu0 0.0
        %767 = vmatpush2.msra.mxu0 0.0
        %768 = vmatprep.subr.mxu0 0.0
        %769 = vmatpush2.msra.mxu0 0.0
        %770 = vmatprep.subr.mxu0 0.0
        %771 = vmatpush2.msra.mxu0 0.0
        %772 = vmatprep.subr.mxu0 0.0
        %773 = vmatpush2.msra.mxu0 0.0
        %774 = vmatprep.subr.mxu0 0.0
        %775 = vmatpush2.msra.mxu0 0.0
        %776 = vmatprep.subr.mxu0 0.0
        %777 = vmatpush2.msra.mxu0 0.0
        %778 = vmatprep.subr.mxu0 0.0
        %779 = vmatpush2.msra.mxu0 0.0
        %780 = vmatprep.subr.mxu0 0.0
        %781 = vmatpush2.msra.mxu0 0.0
        %782 = vmatprep.subr.mxu0 0.0
        %783 = vmatpush2.msra.mxu0 0.0
        %784 = vmatprep.subr.mxu0 0.0
        %785 = vmatpush2.msra.mxu0 0.0
        %786 = vmatprep.subr.mxu0 0.0
        %787 = vmatpush2.msra.mxu0 0.0
        %788 = vmatprep.subr.mxu0 0.0
        %789 = vmatpush2.msra.mxu0 0.0
        %790 = vmatprep.subr.mxu0 0.0
        %791 = vmatpush2.msra.mxu0 0.0
        %792 = vmatprep.mubr.f32.mxu0 0.0
        %793 = vmatmul.mubr.f32.gmra.mxu0 %v726
        %v794 = vpop.f32.mrf.mxu0
        %v795 = vadd.f32 %v723, %v794
        %v796 = vpop.f32.mrf.mxu0
        %797 = vdwg.mxu0
        %v798 = vxor.u32 %v795, 2147483648
        %v799 = vmul.f32 %v798, 1.442695
        %v800 = vpow.pop %v799
        %v801 = vadd.f32 %v800, 1.0
        %v802 = vrcp.pop %v801
        %v803 = vmul.f32 1.0, %v802
        %v804 = vmul.f32 %v795, %v803
        %v805 = vld [vmem:[%s2 + $0x60] sm:$0xff]
        %v806 = vld [vmem:[%s2 + $0x68] sm:$0xff]
        %v807 = vld [vmem:[%s2 + $0x70] sm:$0xff]
        %v808 = vld [vmem:[%s2 + $0x78] sm:$0xff]
        %v809 = vld [vmem:[%s2 + $0x80] sm:$0xff]
        %v810 = vld [vmem:[%s2 + $0x88] sm:$0xff]
        %v811 = vlaneseq
        %v812 = vshrl.u32 %v811, 7
        %v813 = vsub.s32 4, %v812
        %v814 = vrot.slane %v193, %v813
        %v816 = vsel %vm724, %v804, 0
        %818 = vmatprep.subr.mxu0 0.0
        %819 = vmatpush1.msra.mxu0 0.0
        %820 = vmatprep.subr.mxu0 0.0
        %821 = vmatpush1.msra.mxu0 0.0
        %822 = vmatprep.subr.mxu0 0.0
        %823 = vmatpush1.msra.mxu0 0.0
        %824 = vmatprep.subr.mxu0 0.0
        %825 = vmatpush1.msra.mxu0 0.0
        %826 = vmatprep.subr.mxu0 0.0
        %827 = vmatpush1.msra.mxu0 0.0
        %828 = vmatprep.subr.mxu0 0.0
        %829 = vmatpush1.msra.mxu0 0.0
        %830 = vmatprep.subr.mxu0 0.0
        %831 = vmatpush1.msra.mxu0 0.0
        %832 = vmatprep.subr.mxu0 0.0
        %833 = vmatpush1.msra.mxu0 0.0
        %834 = vmatprep.subr.mxu0 0.0
        %835 = vmatpush1.msra.mxu0 0.0
        %836 = vmatprep.subr.mxu0 0.0
        %837 = vmatpush1.msra.mxu0 0.0
        %838 = vmatprep.subr.mxu0 0.0
        %839 = vmatpush1.msra.mxu0 %v810
        %840 = vmatprep.subr.mxu0 0.0
        %841 = vmatpush1.msra.mxu0 %v809
        %842 = vmatprep.subr.mxu0 0.0
        %843 = vmatpush1.msra.mxu0 %v808
        %844 = vmatprep.subr.mxu0 0.0
        %845 = vmatpush1.msra.mxu0 %v807
        %846 = vmatprep.subr.mxu0 0.0
        %847 = vmatpush1.msra.mxu0 %v806
        %848 = vmatprep.subr.mxu0 0.0
        %849 = vmatpush1.msra.mxu0 %v805
        %850 = vmatprep.subr.mxu0 0.0
        %851 = vmatpush2.msra.mxu0 0.0
        %852 = vmatprep.subr.mxu0 0.0
        %853 = vmatpush2.msra.mxu0 0.0
        %854 = vmatprep.subr.mxu0 0.0
        %855 = vmatpush2.msra.mxu0 0.0
        %856 = vmatprep.subr.mxu0 0.0
        %857 = vmatpush2.msra.mxu0 0.0
        %858 = vmatprep.subr.mxu0 0.0
        %859 = vmatpush2.msra.mxu0 0.0
        %860 = vmatprep.subr.mxu0 0.0
        %861 = vmatpush2.msra.mxu0 0.0
        %862 = vmatprep.subr.mxu0 0.0
        %863 = vmatpush2.msra.mxu0 0.0
        %864 = vmatprep.subr.mxu0 0.0
        %865 = vmatpush2.msra.mxu0 0.0
        %866 = vmatprep.subr.mxu0 0.0
        %867 = vmatpush2.msra.mxu0 0.0
        %868 = vmatprep.subr.mxu0 0.0
        %869 = vmatpush2.msra.mxu0 0.0
        %870 = vmatprep.subr.mxu0 0.0
        %871 = vmatpush2.msra.mxu0 0.0
        %872 = vmatprep.subr.mxu0 0.0
        %873 = vmatpush2.msra.mxu0 0.0
        %874 = vmatprep.subr.mxu0 0.0
        %875 = vmatpush2.msra.mxu0 0.0
        %876 = vmatprep.subr.mxu0 0.0
        %877 = vmatpush2.msra.mxu0 0.0
        %878 = vmatprep.subr.mxu0 0.0
        %879 = vmatpush2.msra.mxu0 0.0
        %880 = vmatprep.subr.mxu0 0.0
        %881 = vmatpush2.msra.mxu0 0.0
        %882 = vmatprep.mubr.f32.mxu0 0.0
        %883 = vmatmul.mubr.f32.gmra.mxu0 %v816
        %v884 = vpop.f32.mrf.mxu0
        %v885 = vadd.f32 %v814, %v884
        %v886 = vpop.f32.mrf.mxu0
        %887 = vdwg.mxu0
        %889 = vrot.lane.b32.xlu0 %v713, 16
        %v890 = vpop.permute.xlu0 %889
        %v892 = vsel %vm364, %v194, %v890
        %v893 = vld [vmem:[%s2 + $0x90] sm:$0xff]
        %v894 = vld [vmem:[%s2 + $0x98] sm:$0xff]
        %v895 = vld [vmem:[%s2 + $0xa0] sm:$0xff]
        %v896 = vld [vmem:[%s2 + $0xa8] sm:$0xff]
        %v897 = vlaneseq
        %v898 = vshrl.u32 %v897, 7
        %v899 = vsub.s32 5, %v898
        %v900 = vrot.slane %v193, %v899
        %v902 = vsel %vm377, %v892, 0
        %904 = vmatprep.subr.mxu0 0.0
        %905 = vmatpush1.msra.mxu0 0.0
        %906 = vmatprep.subr.mxu0 0.0
        %907 = vmatpush1.msra.mxu0 0.0
        %908 = vmatprep.subr.mxu0 0.0
        %909 = vmatpush1.msra.mxu0 0.0
        %910 = vmatprep.subr.mxu0 0.0
        %911 = vmatpush1.msra.mxu0 0.0
        %912 = vmatprep.subr.mxu0 0.0
        %913 = vmatpush1.msra.mxu0 0.0
        %914 = vmatprep.subr.mxu0 0.0
        %915 = vmatpush1.msra.mxu0 0.0
        %916 = vmatprep.subr.mxu0 0.0
        %917 = vmatpush1.msra.mxu0 0.0
        %918 = vmatprep.subr.mxu0 0.0
        %919 = vmatpush1.msra.mxu0 0.0
        %920 = vmatprep.subr.mxu0 0.0
        %921 = vmatpush1.msra.mxu0 0.0
        %922 = vmatprep.subr.mxu0 0.0
        %923 = vmatpush1.msra.mxu0 0.0
        %924 = vmatprep.subr.mxu0 0.0
        %925 = vmatpush1.msra.mxu0 0.0
        %926 = vmatprep.subr.mxu0 0.0
        %927 = vmatpush1.msra.mxu0 0.0
        %928 = vmatprep.subr.mxu0 0.0
        %929 = vmatpush1.msra.mxu0 %v896
        %930 = vmatprep.subr.mxu0 0.0
        %931 = vmatpush1.msra.mxu0 %v895
        %932 = vmatprep.subr.mxu0 0.0
        %933 = vmatpush1.msra.mxu0 %v894
        %934 = vmatprep.subr.mxu0 0.0
        %935 = vmatpush1.msra.mxu0 %v893
        %936 = vmatprep.subr.mxu0 0.0
        %937 = vmatpush2.msra.mxu0 0.0
        %938 = vmatprep.subr.mxu0 0.0
        %939 = vmatpush2.msra.mxu0 0.0
        %940 = vmatprep.subr.mxu0 0.0
        %941 = vmatpush2.msra.mxu0 0.0
        %942 = vmatprep.subr.mxu0 0.0
        %943 = vmatpush2.msra.mxu0 0.0
        %944 = vmatprep.subr.mxu0 0.0
        %945 = vmatpush2.msra.mxu0 0.0
        %946 = vmatprep.subr.mxu0 0.0
        %947 = vmatpush2.msra.mxu0 0.0
        %948 = vmatprep.subr.mxu0 0.0
        %949 = vmatpush2.msra.mxu0 0.0
        %950 = vmatprep.subr.mxu0 0.0
        %951 = vmatpush2.msra.mxu0 0.0
        %952 = vmatprep.subr.mxu0 0.0
        %953 = vmatpush2.msra.mxu0 0.0
        %954 = vmatprep.subr.mxu0 0.0
        %955 = vmatpush2.msra.mxu0 0.0
        %956 = vmatprep.subr.mxu0 0.0
        %957 = vmatpush2.msra.mxu0 0.0
        %958 = vmatprep.subr.mxu0 0.0
        %959 = vmatpush2.msra.mxu0 0.0
        %960 = vmatprep.subr.mxu0 0.0
        %961 = vmatpush2.msra.mxu0 0.0
        %962 = vmatprep.subr.mxu0 0.0
        %963 = vmatpush2.msra.mxu0 0.0
        %964 = vmatprep.subr.mxu0 0.0
        %965 = vmatpush2.msra.mxu0 0.0
        %966 = vmatprep.subr.mxu0 0.0
        %967 = vmatpush2.msra.mxu0 0.0
        %968 = vmatprep.mubr.f32.mxu0 0.0
        %969 = vmatmul.mubr.f32.gmra.mxu0 %v902
        %v970 = vpop.f32.mrf.mxu0
        %v971 = vadd.f32 %v900, %v970
        %v972 = vpop.f32.mrf.mxu0
        %973 = vdwg.mxu0
        %v974 = vxor.u32 %v971, 2147483648
        %v975 = vmul.f32 %v974, 1.442695
        %v976 = vpow.pop %v975
        %v977 = vadd.f32 %v976, 1.0
        %v978 = vrcp.pop %v977
        %v979 = vmul.f32 1.0, %v978
        %v980 = vmul.f32 %v971, %v979
        %v981 = vld [vmem:[%s2 + $0xb0] sm:$0xff]
        %v982 = vld [vmem:[%s2 + $0xb8] sm:$0xff]
        %v983 = vld [vmem:[%s2 + $0xc0] sm:$0xff]
        %v984 = vld [vmem:[%s2 + $0xc8] sm:$0xff]
        %v985 = vlaneseq
        %v986 = vshrl.u32 %v985, 7
        %v987 = vsub.s32 6, %v986
        %v988 = vrot.slane %v193, %v987
        %v990 = vsel %vm377, %v980, 0
        %992 = vmatprep.subr.mxu0 0.0
        %993 = vmatpush1.msra.mxu0 0.0
        %994 = vmatprep.subr.mxu0 0.0
        %995 = vmatpush1.msra.mxu0 0.0
        %996 = vmatprep.subr.mxu0 0.0
        %997 = vmatpush1.msra.mxu0 0.0
        %998 = vmatprep.subr.mxu0 0.0
        %999 = vmatpush1.msra.mxu0 0.0
        %1000 = vmatprep.subr.mxu0 0.0
        %1001 = vmatpush1.msra.mxu0 0.0
        %1002 = vmatprep.subr.mxu0 0.0
        %1003 = vmatpush1.msra.mxu0 0.0
        %1004 = vmatprep.subr.mxu0 0.0
        %1005 = vmatpush1.msra.mxu0 0.0
        %1006 = vmatprep.subr.mxu0 0.0
        %1007 = vmatpush1.msra.mxu0 0.0
        %1008 = vmatprep.subr.mxu0 0.0
        %1009 = vmatpush1.msra.mxu0 0.0
        %1010 = vmatprep.subr.mxu0 0.0
        %1011 = vmatpush1.msra.mxu0 0.0
        %1012 = vmatprep.subr.mxu0 0.0
        %1013 = vmatpush1.msra.mxu0 0.0
        %1014 = vmatprep.subr.mxu0 0.0
        %1015 = vmatpush1.msra.mxu0 0.0
        %1016 = vmatprep.subr.mxu0 0.0
        %1017 = vmatpush1.msra.mxu0 %v984
        %1018 = vmatprep.subr.mxu0 0.0
        %1019 = vmatpush1.msra.mxu0 %v983
        %1020 = vmatprep.subr.mxu0 0.0
        %1021 = vmatpush1.msra.mxu0 %v982
        %1022 = vmatprep.subr.mxu0 0.0
        %1023 = vmatpush1.msra.mxu0 %v981
        %1024 = vmatprep.subr.mxu0 0.0
        %1025 = vmatpush2.msra.mxu0 0.0
        %1026 = vmatprep.subr.mxu0 0.0
        %1027 = vmatpush2.msra.mxu0 0.0
        %1028 = vmatprep.subr.mxu0 0.0
        %1029 = vmatpush2.msra.mxu0 0.0
        %1030 = vmatprep.subr.mxu0 0.0
        %1031 = vmatpush2.msra.mxu0 0.0
        %1032 = vmatprep.subr.mxu0 0.0
        %1033 = vmatpush2.msra.mxu0 0.0
        %1034 = vmatprep.subr.mxu0 0.0
        %1035 = vmatpush2.msra.mxu0 0.0
        %1036 = vmatprep.subr.mxu0 0.0
        %1037 = vmatpush2.msra.mxu0 0.0
        %1038 = vmatprep.subr.mxu0 0.0
        %1039 = vmatpush2.msra.mxu0 0.0
        %1040 = vmatprep.subr.mxu0 0.0
        %1041 = vmatpush2.msra.mxu0 0.0
        %1042 = vmatprep.subr.mxu0 0.0
        %1043 = vmatpush2.msra.mxu0 0.0
        %1044 = vmatprep.subr.mxu0 0.0
        %1045 = vmatpush2.msra.mxu0 0.0
        %1046 = vmatprep.subr.mxu0 0.0
        %1047 = vmatpush2.msra.mxu0 0.0
        %1048 = vmatprep.subr.mxu0 0.0
        %1049 = vmatpush2.msra.mxu0 0.0
        %1050 = vmatprep.subr.mxu0 0.0
        %1051 = vmatpush2.msra.mxu0 0.0
        %1052 = vmatprep.subr.mxu0 0.0
        %1053 = vmatpush2.msra.mxu0 0.0
        %1054 = vmatprep.subr.mxu0 0.0
        %1055 = vmatpush2.msra.mxu0 0.0
        %1056 = vmatprep.mubr.f32.mxu0 0.0
        %1057 = vmatmul.mubr.f32.gmra.mxu0 %v990
        %v1058 = vpop.f32.mrf.mxu0
        %v1059 = vadd.f32 %v988, %v1058
        %v1060 = vpop.f32.mrf.mxu0
        %1061 = vdwg.mxu0
        %v1062 = vadd.f32 %v1059, %v885
        %1063 = vrot.lane.b32.xlu0 %v713, 19
        %v1064 = vpop.permute.xlu0 %1063
        %v1066 = vsel %vm345, %v1062, %v1059
        %vm1067 = vcmask 154624
        %v1068 = vsel %vm1067, %v1066, %v1064
        %vm1069 = vcmask 285696
        %v1070 = vsel %vm1069, %v1068, 0.0
        %1071 = vst [vmem:[%s188] sm:$0xff] %v1070
        %s1072 = sand.u32 %s115, 1
        %s1073 = scalar_lea.sflag [#allocation3], %s1072
        %s1074 = sand.u32 %s115, 1
        %s1075 = smul.addr %s1074, 8
        %s1076 = scalar_lea.vmem [#allocation2], %s1075
        // Predicated region
        $region37: #{tpu_custom_call.1} parent=35 // pred_check
          %p1077 = pneg %p125
        $region38: #{tpu_custom_call.1} parent=35 // pred_check_branch
          %1079 = sbr.rel (%p1077) target = $region40
        $region39: #{tpu_custom_call.1} parent=35 // pred_region
          %s1081 = ssub.s32 128, 128
          %1082 = vsyncadd %s1073, %s1081
          %s1083 = smul.addr %s18, 128
          %s1084 = scalar_lea.hbm %s4, %s1083
          %s1086 = sshll.u32 %s1076, 4
          %s1087 = int_to_ptr.vmem [resolvable:$true] %s1086
          %1089 = dma.vmem_to_hbm [thread:$0]  %s1087, 128, %s1084, %s1073
        $region40: #{tpu_custom_call.1} parent=35 // pred_fallthru
          _
      $region36: #{tpu_custom_call.1} parent=5 // pred_fallthru
        _
      %p1090 = scmp.le.s32.totalorder 2, %s13
      // Predicated region
      $region41: #{tpu_custom_call.1} parent=5 // pred_check
        %p1091 = pneg %p1090
      $region42: #{tpu_custom_call.1} parent=5 // pred_check_branch
        %1093 = sbr.rel (%p1091) target = $region44
      $region43: #{tpu_custom_call.1} parent=5 // pred_region
        %s1094 = ssub.s32 %s13, 2
        // Predicated region
        $region45: #{tpu_custom_call.1} parent=43 // pred_check
          %p1095 = pneg %p131
        $region46: #{tpu_custom_call.1} parent=43 // pred_check_branch
          %1097 = sbr.rel (%p1095) target = $region48
        $region47: #{tpu_custom_call.1} parent=43 // pred_region
          %s1098 = sand.u32 %s116, 1
          %s1099 = scalar_lea.sflag [#allocation3], %s1098
          %s1100 = sand.u32 %s116, 1
          %s1101 = smul.addr %s1100, 8
          %s1102 = scalar_lea.vmem [#allocation2], %s1101
          %1103 = dma.done %s1099, 128
        $region48: #{tpu_custom_call.1} parent=43 // pred_fallthru
          _
      $region44: #{tpu_custom_call.1} parent=5 // pred_fallthru
        _
    $region6: #{tpu_custom_call.1} parent=1 // loop_footer
      %s17 = sadd.s32 1, %s13
    $region7: #{tpu_custom_call.1} parent=1 // loop_footer_branch
      %12 = sbr.rel target = $region3
    $region8: #{tpu_custom_call.1} parent=1 // loop_exit
      _
    %1104 = vsyncpa [#allocation3], 1
    %s1105 = scalar_lea.sflag [#allocation3], 1
    %1106 = vsyncpa %s1105, 1

</llo_original>
